<compile_context>
chip_gen: v7x
topology: tpu7x:2x2x1
jax: 0.10.0
libtpu: 0.0.40
codegen_flags: <defaults>
</compile_context>

<pallas_src>
import jax
import jax.numpy as jnp
from jax.experimental import pallas as pl
from jax.experimental.pallas import tpu as pltpu


def _pool_mean_kernel(neigh_ref, x_ref, o_ref):
    # neigh_ref : VMEM int32 [tile_m, 7]   (1-ring indices for this output tile)
    # x_ref     : VMEM [N, D]              (full fine-mesh features, resident)
    # o_ref     : VMEM [tile_m, D]         (one output tile of pooled nodes)
    tile_m = o_ref.shape[0]
    N = x_ref.shape[0]

    neigh = neigh_ref[...]                                         # (tile_m, 7)
    col = jax.lax.broadcasted_iota(jnp.int32, (tile_m, N), 1)       # lane iota

    # Selection matrix with multiplicity counts (handles repeated indices),
    # built with 7 VPU compares; scaled by 1/7 so the matmul yields the mean.
    sel = jnp.zeros((tile_m, N), jnp.float32)
    for j in range(7):
        sel = sel + (neigh[:, j:j + 1] == col).astype(jnp.float32)
    sel = sel * jnp.float32(1.0 / 7.0)

    out = jnp.dot(
        sel,
        x_ref[...].astype(jnp.float32),
        preferred_element_type=jnp.float32,
        precision=jax.lax.Precision.HIGHEST,
    )
    o_ref[...] = out.astype(o_ref.dtype)


def pool_layer_forward(x, neigh_orders, pooling_type="mean", tile_m=None):
    """Pallas version of sphericalunet pool_layer.forward (mean pooling)."""
    if pooling_type != "mean":
        # TODO(synk): pooling_type='max' (values + argmax indices) not implemented in Pallas.
        raise NotImplementedError("Only pooling_type='mean' is implemented.")

    N, D = x.shape
    num_nodes = (N + 6) // 4

    # Output tile height: multiple of 8 (sublane tiling), capped at 128 so a
    # single MXU pass covers the tile; adapts down so small meshes use 1 step.
    if tile_m is None:
        tile_m = min(128, 8 * pl.cdiv(num_nodes, 8))
    n_pad = tile_m * pl.cdiv(num_nodes, tile_m)

    neigh = neigh_orders[: num_nodes * 7].astype(jnp.int32).reshape(num_nodes, 7)
    if n_pad > num_nodes:
        # pad rows index node 0 (always valid); they are sliced off below.
        neigh = jnp.concatenate(
            [neigh, jnp.zeros((n_pad - num_nodes, 7), jnp.int32)], axis=0
        )

    out_padded = pl.pallas_call(
        _pool_mean_kernel,
        out_shape=jax.ShapeDtypeStruct((n_pad, D), x.dtype),
        grid=(n_pad // tile_m,),
        in_specs=[
            pl.BlockSpec((tile_m, 7), lambda i: (i, 0)),   # neigh tile
            pl.BlockSpec((N, D), lambda i: (0, 0)),        # x resident in VMEM
        ],
        out_specs=pl.BlockSpec((tile_m, D), lambda i: (i, 0)),
        compiler_params=pltpu.CompilerParams(
            dimension_semantics=("parallel",),  # shard output tiles across TCs (v7x)
        ),
    )(neigh, x)

    return out_padded[:num_nodes]


def pool_layer_reference(x, neigh_orders):
    # Pure-JAX mirror of the PyTorch forward (mean pooling).
    num_nodes = (x.shape[0] + 6) // 4
    feat = x.shape[1]
    g = x[neigh_orders[: num_nodes * 7]].reshape(num_nodes, 7, feat)
    return jnp.mean(g, axis=1)


if __name__ == "__main__":
    # icosahedron level-2 sphere: N = 42 fine vertices -> pooled mesh has (42+6)/4 = 12
    N = 42
    D = 128  # lane-dense feature width (multiple of 128)
    num_nodes = (N + 6) // 4

    key = jax.random.PRNGKey(0)
    kx, kn = jax.random.split(key)

    x = jax.random.normal(kx, (N, D), dtype=jnp.float32)
    # TODO(synk): real neigh_orders come from icosahedron 1-ring connectivity; synthetic here.
    neigh_orders = jax.random.randint(kn, (N * 7,), 0, N, dtype=jnp.int32)

    out = pool_layer_forward(x, neigh_orders, pooling_type="mean")
    out = jax.block_until_ready(out)

    ref = pool_layer_reference(x, neigh_orders)
    assert out.shape == (num_nodes, D)
    assert jnp.allclose(out, ref, atol=1e-5, rtol=1e-5)
    print("KERNEL_OK")
</pallas_src>

<mosaic_0001>
module attributes {stable_mosaic.version = 11 : i64} {
  func.func @_pool_mean_kernel(%arg0: i32, %arg1: memref<16x7xi32, #tpu.memory_space<vmem>>, %arg2: memref<42x128xf32, #tpu.memory_space<vmem>>, %arg3: memref<16x128xf32, #tpu.memory_space<vmem>>) attributes {dimension_semantics = [#tpu.dimension_semantics<parallel>], iteration_bounds = array<i64: 1>, scalar_prefetch = 0 : i64, scratch_operands = 0 : i64, tpu.core_type = #tpu.core_type<tc>, window_params = [{transform_indices = @transform_0, window_bounds = array<i64: 16, 7>}, {pipeline_mode = #tpu.pipeline_mode<synchronous>, transform_indices = @transform_1, window_bounds = array<i64: 42, 128>}, {transform_indices = @transform_2, window_bounds = array<i64: 16, 128>}]} {
    %c0 = arith.constant 0 : index
    %c0_0 = arith.constant 0 : index
    %0 = vector.load %arg1[%c0, %c0_0] : memref<16x7xi32, #tpu.memory_space<vmem>>, vector<16x7xi32>
    %1 = tpu.iota {dimensions = array<i32: 1>} : vector<16x42xi32>
    %cst = arith.constant 0.000000e+00 : f32
    %2 = vector.broadcast %cst : f32 to vector<16x42xf32>
    %3 = vector.extract_strided_slice %0 {offsets = [0, 0], sizes = [16, 1], strides = [1, 1]} : vector<16x7xi32> to vector<16x1xi32>
    %4 = vector.broadcast %3 : vector<16x1xi32> to vector<16x42xi32>
    %5 = arith.cmpi eq, %4, %1 : vector<16x42xi32>
    %6 = arith.extui %5 : vector<16x42xi1> to vector<16x42xi32>
    %7 = arith.sitofp %6 : vector<16x42xi32> to vector<16x42xf32>
    %8 = arith.addf %2, %7 : vector<16x42xf32>
    %9 = vector.extract_strided_slice %0 {offsets = [0, 1], sizes = [16, 1], strides = [1, 1]} : vector<16x7xi32> to vector<16x1xi32>
    %10 = vector.broadcast %9 : vector<16x1xi32> to vector<16x42xi32>
    %11 = arith.cmpi eq, %10, %1 : vector<16x42xi32>
    %12 = arith.extui %11 : vector<16x42xi1> to vector<16x42xi32>
    %13 = arith.sitofp %12 : vector<16x42xi32> to vector<16x42xf32>
    %14 = arith.addf %8, %13 : vector<16x42xf32>
    %15 = vector.extract_strided_slice %0 {offsets = [0, 2], sizes = [16, 1], strides = [1, 1]} : vector<16x7xi32> to vector<16x1xi32>
    %16 = vector.broadcast %15 : vector<16x1xi32> to vector<16x42xi32>
    %17 = arith.cmpi eq, %16, %1 : vector<16x42xi32>
    %18 = arith.extui %17 : vector<16x42xi1> to vector<16x42xi32>
    %19 = arith.sitofp %18 : vector<16x42xi32> to vector<16x42xf32>
    %20 = arith.addf %14, %19 : vector<16x42xf32>
    %21 = vector.extract_strided_slice %0 {offsets = [0, 3], sizes = [16, 1], strides = [1, 1]} : vector<16x7xi32> to vector<16x1xi32>
    %22 = vector.broadcast %21 : vector<16x1xi32> to vector<16x42xi32>
    %23 = arith.cmpi eq, %22, %1 : vector<16x42xi32>
    %24 = arith.extui %23 : vector<16x42xi1> to vector<16x42xi32>
    %25 = arith.sitofp %24 : vector<16x42xi32> to vector<16x42xf32>
    %26 = arith.addf %20, %25 : vector<16x42xf32>
    %27 = vector.extract_strided_slice %0 {offsets = [0, 4], sizes = [16, 1], strides = [1, 1]} : vector<16x7xi32> to vector<16x1xi32>
    %28 = vector.broadcast %27 : vector<16x1xi32> to vector<16x42xi32>
    %29 = arith.cmpi eq, %28, %1 : vector<16x42xi32>
    %30 = arith.extui %29 : vector<16x42xi1> to vector<16x42xi32>
    %31 = arith.sitofp %30 : vector<16x42xi32> to vector<16x42xf32>
    %32 = arith.addf %26, %31 : vector<16x42xf32>
    %33 = vector.extract_strided_slice %0 {offsets = [0, 5], sizes = [16, 1], strides = [1, 1]} : vector<16x7xi32> to vector<16x1xi32>
    %34 = vector.broadcast %33 : vector<16x1xi32> to vector<16x42xi32>
    %35 = arith.cmpi eq, %34, %1 : vector<16x42xi32>
    %36 = arith.extui %35 : vector<16x42xi1> to vector<16x42xi32>
    %37 = arith.sitofp %36 : vector<16x42xi32> to vector<16x42xf32>
    %38 = arith.addf %32, %37 : vector<16x42xf32>
    %39 = vector.extract_strided_slice %0 {offsets = [0, 6], sizes = [16, 1], strides = [1, 1]} : vector<16x7xi32> to vector<16x1xi32>
    %40 = vector.broadcast %39 : vector<16x1xi32> to vector<16x42xi32>
    %41 = arith.cmpi eq, %40, %1 : vector<16x42xi32>
    %42 = arith.extui %41 : vector<16x42xi1> to vector<16x42xi32>
    %43 = arith.sitofp %42 : vector<16x42xi32> to vector<16x42xf32>
    %44 = arith.addf %38, %43 : vector<16x42xf32>
    %cst_1 = arith.constant 0.142857149 : f32
    %45 = vector.broadcast %cst_1 : f32 to vector<16x42xf32>
    %46 = arith.mulf %44, %45 : vector<16x42xf32>
    %c0_2 = arith.constant 0 : index
    %c0_3 = arith.constant 0 : index
    %47 = vector.load %arg2[%c0_2, %c0_3] : memref<42x128xf32, #tpu.memory_space<vmem>>, vector<42x128xf32>
    %cst_4 = arith.constant dense<0.000000e+00> : vector<16x128xf32>
    %48 = tpu.matmul %46, %47, %cst_4 {dimension_numbers = #tpu.dot_dimension_numbers<[1], [0], [0], [1], [0, 0, 1, 1], [], []>, precision = #tpu.contract_precision<fp32>} : vector<16x42xf32>, vector<42x128xf32>, vector<16x128xf32> -> vector<16x128xf32>
    %c0_5 = arith.constant 0 : index
    %c0_6 = arith.constant 0 : index
    %49 = vector.load %arg3[%c0_5, %c0_6] : memref<16x128xf32, #tpu.memory_space<vmem>>, vector<16x128xf32>
    tpu.vector_store %arg3[%c0_5, %c0_6], %48 {strides = array<i32>} : memref<16x128xf32, #tpu.memory_space<vmem>>, vector<16x128xf32>,
    return
  }
  func.func @transform_0(%arg0: i32) -> (i32, i32) {
    %c0_i32 = arith.constant 0 : i32
    %c0_i32_0 = arith.constant 0 : i32
    return %arg0, %c0_i32 : i32, i32
  }
  func.func @transform_1(%arg0: i32) -> (i32, i32) {
    %c0_i32 = arith.constant 0 : i32
    %c0_i32_0 = arith.constant 0 : i32
    %c0_i32_1 = arith.constant 0 : i32
    return %c0_i32, %c0_i32_0 : i32, i32
  }
  func.func @transform_2(%arg0: i32) -> (i32, i32) {
    %c0_i32 = arith.constant 0 : i32
    %c0_i32_0 = arith.constant 0 : i32
    return %arg0, %c0_i32 : i32, i32
  }
}

</mosaic_0001>

<llo_original>
// kernel: tpu_custom_call.1
$region0: #{tpu_custom_call.1}
  #allocation0 [shape = 'u32[]', space=smem, size = 0x4, offset = 0x4, fixed_abs, tag = 'smem constant byte address 0x4 - core index']
  #allocation1 [shape = 'u32[144,128]{1,0:T(1,128)}', space=vmem, size = 0x12000, scoped, tag = 'internal scratch']
  %s0 = inlined_call_operand.vmem [shape: s32[16,7], index: 0, kind: input, shape index: {}]
  %s1 = inlined_call_operand.hbm [shape: f32[42,128], index: 1, kind: input, shape index: {}]
  %s2 = inlined_call_operand.hbm [shape: f32[16,128], index: 2, kind: output, shape index: {}]
  %s3 = sld [smem:[#allocation0]]
  $region22: #{tpu_custom_call.1} parent=0
    _
  %s5 = ssub.s32 1, %s3
  %s6 = scalar_select 0, %s5, %s3
  $region1: #{tpu_custom_call.1} parent=0
    #allocation2 [shape = 'u8[24576]{0}', space=vmem, size = 0x6000, scoped, tag = 'input window, operand 1, single buffered']
    #allocation3 [shape = 's32[1]{0}', space=sflag, size = 0x4, scoped, tag = 'scoped memory for tpu_custom_call.1']
    #allocation4 [shape = 's32[1]{0}', space=sflag, size = 0x4, scoped, tag = 'scoped memory for tpu_custom_call.1']
    #allocation5 [shape = 'u8[8192]{0}', space=vmem, size = 0x2000, scoped, tag = 'output window, operand 0, single buffered']
    %7 = vsyncpa [#allocation3], 0
    %8 = vsyncpa [#allocation4], 0
    // Predicated region
    $region2: #{tpu_custom_call.1} parent=1 // pred_check
      _
    $region3: #{tpu_custom_call.1} parent=1 // pred_check_branch
      %10 = sbr.rel (0) target = $region5
    $region4: #{tpu_custom_call.1} parent=1 // pred_region
      _
    $region5: #{tpu_custom_call.1} parent=1 // pred_fallthru
      _
    // Predicated region
    $region6: #{tpu_custom_call.1} parent=1 // pred_check
      _
    $region7: #{tpu_custom_call.1} parent=1 // pred_check_branch
      %12 = sbr.rel (0) target = $region9
    $region8: #{tpu_custom_call.1} parent=1 // pred_region
      %s14 = ssub.s32 768, 768
      %15 = vsyncadd [#allocation3], %s14
      %s16 = sshll.u32 [#allocation2], 4
      %s17 = int_to_ptr.vmem [resolvable:$true] %s16
      %22 = dma.hbm_to_vmem [thread:$0]  %s1, 768, %s17, [#allocation3], 128, 128, 8
    $region9: #{tpu_custom_call.1} parent=1 // pred_fallthru
      _
    // Predicated region
    $region10: #{tpu_custom_call.1} parent=1 // pred_check
      _
    $region11: #{tpu_custom_call.1} parent=1 // pred_check_branch
      %24 = sbr.rel (0) target = $region13
    $region12: #{tpu_custom_call.1} parent=1 // pred_region
      %25 = dma.done [#allocation3], 768
    $region13: #{tpu_custom_call.1} parent=1 // pred_fallthru
      _
    %v26 = vld [vmem:[%s0] sm:$0xff]
    %v27 = vld [vmem:[%s0 + $0x8] sm:$0xff]
    %v28 = vlaneseq
    %v29 = vand.u32 %v28, 127
    %30 = vset.pattern.permute.xlu0 0
    %31 = vperm.xlu0 %30, %v26
    %v32 = vpop.permute.xlu0 %31
    %33 = vset.pattern.permute.xlu0 0
    %34 = vperm.xlu0 %33, %v27
    %v35 = vpop.permute.xlu0 %34
    %vm36 = vcmp.eq.s32.totalorder %v32, %v29
    %vm37 = vcmp.eq.s32.totalorder %v35, %v29
    %v38 = vsel %vm36, 1, 0
    %v39 = vsel %vm37, 1, 0
    %v40 = vcvt.s32.f32 %v38
    %v41 = vcvt.s32.f32 %v39
    %v42 = vadd.f32 %v40, 0.0
    %v43 = vadd.f32 %v41, 0.0
    %44 = vset.pattern.permute.xlu0 1
    %45 = vperm.xlu0 %44, %v26
    %v46 = vpop.permute.xlu0 %45
    %47 = vset.pattern.permute.xlu0 1
    %48 = vperm.xlu0 %47, %v27
    %v49 = vpop.permute.xlu0 %48
    %vm50 = vcmp.eq.s32.totalorder %v46, %v29
    %vm51 = vcmp.eq.s32.totalorder %v49, %v29
    %v52 = vsel %vm50, 1, 0
    %v53 = vsel %vm51, 1, 0
    %v54 = vcvt.s32.f32 %v52
    %v55 = vcvt.s32.f32 %v53
    %v56 = vadd.f32 %v42, %v54
    %v57 = vadd.f32 %v43, %v55
    %58 = vset.pattern.permute.xlu0 2
    %59 = vperm.xlu0 %58, %v26
    %v60 = vpop.permute.xlu0 %59
    %61 = vset.pattern.permute.xlu0 2
    %62 = vperm.xlu0 %61, %v27
    %v63 = vpop.permute.xlu0 %62
    %vm64 = vcmp.eq.s32.totalorder %v60, %v29
    %vm65 = vcmp.eq.s32.totalorder %v63, %v29
    %v66 = vsel %vm64, 1, 0
    %v67 = vsel %vm65, 1, 0
    %v68 = vcvt.s32.f32 %v66
    %v69 = vcvt.s32.f32 %v67
    %v70 = vadd.f32 %v56, %v68
    %v71 = vadd.f32 %v57, %v69
    %72 = vset.pattern.permute.xlu0 3
    %73 = vperm.xlu0 %72, %v26
    %v74 = vpop.permute.xlu0 %73
    %75 = vset.pattern.permute.xlu0 3
    %76 = vperm.xlu0 %75, %v27
    %v77 = vpop.permute.xlu0 %76
    %vm78 = vcmp.eq.s32.totalorder %v74, %v29
    %vm79 = vcmp.eq.s32.totalorder %v77, %v29
    %v80 = vsel %vm78, 1, 0
    %v81 = vsel %vm79, 1, 0
    %v82 = vcvt.s32.f32 %v80
    %v83 = vcvt.s32.f32 %v81
    %v84 = vadd.f32 %v70, %v82
    %v85 = vadd.f32 %v71, %v83
    %86 = vset.pattern.permute.xlu0 4
    %87 = vperm.xlu0 %86, %v26
    %v88 = vpop.permute.xlu0 %87
    %89 = vset.pattern.permute.xlu0 4
    %90 = vperm.xlu0 %89, %v27
    %v91 = vpop.permute.xlu0 %90
    %vm92 = vcmp.eq.s32.totalorder %v88, %v29
    %vm93 = vcmp.eq.s32.totalorder %v91, %v29
    %v94 = vsel %vm92, 1, 0
    %v95 = vsel %vm93, 1, 0
    %v96 = vcvt.s32.f32 %v94
    %v97 = vcvt.s32.f32 %v95
    %v98 = vadd.f32 %v84, %v96
    %v99 = vadd.f32 %v85, %v97
    %100 = vset.pattern.permute.xlu0 5
    %101 = vperm.xlu0 %100, %v26
    %v102 = vpop.permute.xlu0 %101
    %103 = vset.pattern.permute.xlu0 5
    %104 = vperm.xlu0 %103, %v27
    %v105 = vpop.permute.xlu0 %104
    %vm106 = vcmp.eq.s32.totalorder %v102, %v29
    %vm107 = vcmp.eq.s32.totalorder %v105, %v29
    %v108 = vsel %vm106, 1, 0
    %v109 = vsel %vm107, 1, 0
    %v110 = vcvt.s32.f32 %v108
    %v111 = vcvt.s32.f32 %v109
    %v112 = vadd.f32 %v98, %v110
    %v113 = vadd.f32 %v99, %v111
    %114 = vset.pattern.permute.xlu0 6
    %115 = vperm.xlu0 %114, %v26
    %v116 = vpop.permute.xlu0 %115
    %117 = vset.pattern.permute.xlu0 6
    %118 = vperm.xlu0 %117, %v27
    %v119 = vpop.permute.xlu0 %118
    %vm120 = vcmp.eq.s32.totalorder %v116, %v29
    %vm121 = vcmp.eq.s32.totalorder %v119, %v29
    %v122 = vsel %vm120, 1, 0
    %v123 = vsel %vm121, 1, 0
    %v124 = vcvt.s32.f32 %v122
    %v125 = vcvt.s32.f32 %v123
    %v126 = vadd.f32 %v112, %v124
    %v127 = vadd.f32 %v113, %v125
    %v128 = vmul.f32 %v126, 0.14285715
    %v129 = vmul.f32 %v127, 0.14285715
    %v130 = vld [vmem:[#allocation2] sm:$0xff]
    %v131 = vld [vmem:[#allocation2 + $0x8] sm:$0xff]
    %v132 = vld [vmem:[#allocation2 + $0x10] sm:$0xff]
    %v133 = vld [vmem:[#allocation2 + $0x18] sm:$0xff]
    %v134 = vld [vmem:[#allocation2 + $0x20] sm:$0xff]
    %v135 = vld [vmem:[#allocation2 + $0x28] sm:$0x3]
    %vm136 = vcmask 343040
    %v138 = vsel %vm136, %v128, 0
    %v141 = vsel %vm136, %v129, 0
    %vm143 = vcmask 1041408
    %v145 = vsel %vm143, %v135, 0
    %147 = vmatprep.subr.mxu0 0.0
    %v148 = vand.u32 %v130, 4294901760
    %149 = vmatpush1.msra.mxu0 %v148
    %150 = vmatprep.subr.mxu0 0.0
    %v151 = vand.u32 %v131, 4294901760
    %152 = vmatpush1.msra.mxu0 %v151
    %153 = vmatprep.subr.mxu0 0.0
    %v154 = vand.u32 %v132, 4294901760
    %155 = vmatpush1.msra.mxu0 %v154
    %156 = vmatprep.subr.mxu0 0.0
    %v157 = vand.u32 %v133, 4294901760
    %158 = vmatpush1.msra.mxu0 %v157
    %159 = vmatprep.subr.mxu0 0.0
    %v160 = vand.u32 %v134, 4294901760
    %161 = vmatpush1.msra.mxu0 %v160
    %162 = vmatprep.subr.mxu0 0.0
    %v163 = vand.u32 %v145, 4294901760
    %164 = vmatpush1.msra.mxu0 %v163
    %165 = vmatprep.subr.mxu0 0.0
    %166 = vmatpush1.msra.mxu0 0.0
    %167 = vmatprep.subr.mxu0 0.0
    %168 = vmatpush1.msra.mxu0 0.0
    %169 = vmatprep.subr.mxu0 0.0
    %170 = vmatpush1.msra.mxu0 0.0
    %171 = vmatprep.subr.mxu0 0.0
    %172 = vmatpush1.msra.mxu0 0.0
    %173 = vmatprep.subr.mxu0 0.0
    %174 = vmatpush1.msra.mxu0 0.0
    %175 = vmatprep.subr.mxu0 0.0
    %176 = vmatpush1.msra.mxu0 0.0
    %177 = vmatprep.subr.mxu0 0.0
    %178 = vmatpush1.msra.mxu0 0.0
    %179 = vmatprep.subr.mxu0 0.0
    %180 = vmatpush1.msra.mxu0 0.0
    %181 = vmatprep.subr.mxu0 0.0
    %182 = vmatpush1.msra.mxu0 0.0
    %183 = vmatprep.subr.mxu0 0.0
    %184 = vmatpush1.msra.mxu0 0.0
    %185 = vmatprep.subr.mxu0 0.0
    %186 = vmatpush1.msra.mxu0 0.0
    %187 = vmatprep.subr.mxu0 0.0
    %188 = vmatpush1.msra.mxu0 0.0
    %189 = vmatprep.subr.mxu0 0.0
    %190 = vmatpush1.msra.mxu0 0.0
    %191 = vmatprep.subr.mxu0 0.0
    %192 = vmatpush1.msra.mxu0 0.0
    %193 = vmatprep.subr.mxu0 0.0
    %194 = vmatpush1.msra.mxu0 0.0
    %195 = vmatprep.subr.mxu0 0.0
    %196 = vmatpush1.msra.mxu0 0.0
    %197 = vmatprep.subr.mxu0 0.0
    %198 = vmatpush1.msra.mxu0 0.0
    %199 = vmatprep.subr.mxu0 0.0
    %200 = vmatpush1.msra.mxu0 0.0
    %201 = vmatprep.subr.mxu0 0.0
    %202 = vmatpush1.msra.mxu0 0.0
    %203 = vmatprep.subr.mxu0 0.0
    %204 = vmatpush1.msra.mxu0 0.0
    %205 = vmatprep.subr.mxu0 0.0
    %206 = vmatpush1.msra.mxu0 0.0
    %207 = vmatprep.subr.mxu0 0.0
    %208 = vmatpush1.msra.mxu0 0.0
    %209 = vmatprep.subr.mxu0 0.0
    %210 = vmatpush1.msra.mxu0 0.0
    %211 = vmatprep.subr.mxu0 0.0
    %212 = vmatpush1.msra.mxu0 0.0
    %213 = vmatprep.subr.mxu0 0.0
    %214 = vmatpush1.msra.mxu0 0.0
    %215 = vmatprep.subr.mxu0 0.0
    %216 = vmatpush1.msra.mxu0 0.0
    %217 = vmatprep.mubr.f32.mxu0 0.0
    %v218 = vand.u32 %v138, 4294901760
    %v219 = vsub.f32 %v138, %v218
    %v220 = vand.u32 %v219, 4294901760
    %v221 = vsub.f32 %v219, %v220
    %v222 = vand.u32 %v221, 4294901760
    %223 = vmatmul.mubr.f32.gmra.mrb[0].mxu0 %v222
    %v224 = vpop.f32.mrb[0].mxu0
    %v225 = vadd.f32 0.0, %v224
    %v226 = vpop.f32.mrb[0].mxu0
    %227 = vmatprep.mubr.f32.mxu0 0.0
    %v228 = vand.u32 %v141, 4294901760
    %v229 = vsub.f32 %v141, %v228
    %v230 = vand.u32 %v229, 4294901760
    %v231 = vsub.f32 %v229, %v230
    %v232 = vand.u32 %v231, 4294901760
    %233 = vmatmul.mubr.f32.gmra.mrb[0].mxu0 %v232
    %v234 = vpop.f32.mrb[0].mxu0
    %v235 = vadd.f32 0.0, %v234
    %v236 = vpop.f32.mrb[0].mxu0
    %237 = vdwg.mxu0
    %238 = vmatprep.subr.mxu0 0.0
    %v239 = vand.u32 %v130, 4294901760
    %v240 = vsub.f32 %v130, %v239
    %v241 = vand.u32 %v240, 4294901760
    %v242 = vsub.f32 %v240, %v241
    %v243 = vand.u32 %v242, 4294901760
    %244 = vmatpush1.msra.mxu0 %v243
    %245 = vmatprep.subr.mxu0 0.0
    %v246 = vand.u32 %v131, 4294901760
    %v247 = vsub.f32 %v131, %v246
    %v248 = vand.u32 %v247, 4294901760
    %v249 = vsub.f32 %v247, %v248
    %v250 = vand.u32 %v249, 4294901760
    %251 = vmatpush1.msra.mxu0 %v250
    %252 = vmatprep.subr.mxu0 0.0
    %v253 = vand.u32 %v132, 4294901760
    %v254 = vsub.f32 %v132, %v253
    %v255 = vand.u32 %v254, 4294901760
    %v256 = vsub.f32 %v254, %v255
    %v257 = vand.u32 %v256, 4294901760
    %258 = vmatpush1.msra.mxu0 %v257
    %259 = vmatprep.subr.mxu0 0.0
    %v260 = vand.u32 %v133, 4294901760
    %v261 = vsub.f32 %v133, %v260
    %v262 = vand.u32 %v261, 4294901760
    %v263 = vsub.f32 %v261, %v262
    %v264 = vand.u32 %v263, 4294901760
    %265 = vmatpush1.msra.mxu0 %v264
    %266 = vmatprep.subr.mxu0 0.0
    %v267 = vand.u32 %v134, 4294901760
    %v268 = vsub.f32 %v134, %v267
    %v269 = vand.u32 %v268, 4294901760
    %v270 = vsub.f32 %v268, %v269
    %v271 = vand.u32 %v270, 4294901760
    %272 = vmatpush1.msra.mxu0 %v271
    %273 = vmatprep.subr.mxu0 0.0
    %v274 = vand.u32 %v145, 4294901760
    %v275 = vsub.f32 %v145, %v274
    %v276 = vand.u32 %v275, 4294901760
    %v277 = vsub.f32 %v275, %v276
    %v278 = vand.u32 %v277, 4294901760
    %279 = vmatpush1.msra.mxu0 %v278
    %280 = vmatprep.subr.mxu0 0.0
    %281 = vmatpush1.msra.mxu0 0.0
    %282 = vmatprep.subr.mxu0 0.0
    %283 = vmatpush1.msra.mxu0 0.0
    %284 = vmatprep.subr.mxu0 0.0
    %285 = vmatpush1.msra.mxu0 0.0
    %286 = vmatprep.subr.mxu0 0.0
    %287 = vmatpush1.msra.mxu0 0.0
    %288 = vmatprep.subr.mxu0 0.0
    %289 = vmatpush1.msra.mxu0 0.0
    %290 = vmatprep.subr.mxu0 0.0
    %291 = vmatpush1.msra.mxu0 0.0
    %292 = vmatprep.subr.mxu0 0.0
    %293 = vmatpush1.msra.mxu0 0.0
    %294 = vmatprep.subr.mxu0 0.0
    %295 = vmatpush1.msra.mxu0 0.0
    %296 = vmatprep.subr.mxu0 0.0
    %297 = vmatpush1.msra.mxu0 0.0
    %298 = vmatprep.subr.mxu0 0.0
    %299 = vmatpush1.msra.mxu0 0.0
    %300 = vmatprep.subr.mxu0 0.0
    %301 = vmatpush1.msra.mxu0 0.0
    %302 = vmatprep.subr.mxu0 0.0
    %303 = vmatpush1.msra.mxu0 0.0
    %304 = vmatprep.subr.mxu0 0.0
    %305 = vmatpush1.msra.mxu0 0.0
    %306 = vmatprep.subr.mxu0 0.0
    %307 = vmatpush1.msra.mxu0 0.0
    %308 = vmatprep.subr.mxu0 0.0
    %309 = vmatpush1.msra.mxu0 0.0
    %310 = vmatprep.subr.mxu0 0.0
    %311 = vmatpush1.msra.mxu0 0.0
    %312 = vmatprep.subr.mxu0 0.0
    %313 = vmatpush1.msra.mxu0 0.0
    %314 = vmatprep.subr.mxu0 0.0
    %315 = vmatpush1.msra.mxu0 0.0
    %316 = vmatprep.subr.mxu0 0.0
    %317 = vmatpush1.msra.mxu0 0.0
    %318 = vmatprep.subr.mxu0 0.0
    %319 = vmatpush1.msra.mxu0 0.0
    %320 = vmatprep.subr.mxu0 0.0
    %321 = vmatpush1.msra.mxu0 0.0
    %322 = vmatprep.subr.mxu0 0.0
    %323 = vmatpush1.msra.mxu0 0.0
    %324 = vmatprep.subr.mxu0 0.0
    %325 = vmatpush1.msra.mxu0 0.0
    %326 = vmatprep.subr.mxu0 0.0
    %327 = vmatpush1.msra.mxu0 0.0
    %328 = vmatprep.subr.mxu0 0.0
    %329 = vmatpush1.msra.mxu0 0.0
    %330 = vmatprep.subr.mxu0 0.0
    %331 = vmatpush1.msra.mxu0 0.0
    %332 = vmatprep.mubr.f32.mxu0 0.0
    %v333 = vand.u32 %v138, 4294901760
    %334 = vmatmul.mubr.f32.gmra.mrb[0].mxu0 %v333
    %v335 = vpop.f32.mrb[0].mxu0
    %v336 = vadd.f32 %v225, %v335
    %v337 = vpop.f32.mrb[0].mxu0
    %338 = vmatprep.mubr.f32.mxu0 0.0
    %v339 = vand.u32 %v141, 4294901760
    %340 = vmatmul.mubr.f32.gmra.mrb[0].mxu0 %v339
    %v341 = vpop.f32.mrb[0].mxu0
    %v342 = vadd.f32 %v235, %v341
    %v343 = vpop.f32.mrb[0].mxu0
    %344 = vdwg.mxu0
    %345 = vmatprep.subr.mxu0 0.0
    %v346 = vand.u32 %v130, 4294901760
    %v347 = vsub.f32 %v130, %v346
    %348 = vmatpush1.msra.mxu0 %v347
    %349 = vmatprep.subr.mxu0 0.0
    %v350 = vand.u32 %v131, 4294901760
    %v351 = vsub.f32 %v131, %v350
    %352 = vmatpush1.msra.mxu0 %v351
    %353 = vmatprep.subr.mxu0 0.0
    %v354 = vand.u32 %v132, 4294901760
    %v355 = vsub.f32 %v132, %v354
    %356 = vmatpush1.msra.mxu0 %v355
    %357 = vmatprep.subr.mxu0 0.0
    %v358 = vand.u32 %v133, 4294901760
    %v359 = vsub.f32 %v133, %v358
    %360 = vmatpush1.msra.mxu0 %v359
    %361 = vmatprep.subr.mxu0 0.0
    %v362 = vand.u32 %v134, 4294901760
    %v363 = vsub.f32 %v134, %v362
    %364 = vmatpush1.msra.mxu0 %v363
    %365 = vmatprep.subr.mxu0 0.0
    %v366 = vand.u32 %v145, 4294901760
    %v367 = vsub.f32 %v145, %v366
    %368 = vmatpush1.msra.mxu0 %v367
    %369 = vmatprep.subr.mxu0 0.0
    %370 = vmatpush1.msra.mxu0 0.0
    %371 = vmatprep.subr.mxu0 0.0
    %372 = vmatpush1.msra.mxu0 0.0
    %373 = vmatprep.subr.mxu0 0.0
    %374 = vmatpush1.msra.mxu0 0.0
    %375 = vmatprep.subr.mxu0 0.0
    %376 = vmatpush1.msra.mxu0 0.0
    %377 = vmatprep.subr.mxu0 0.0
    %378 = vmatpush1.msra.mxu0 0.0
    %379 = vmatprep.subr.mxu0 0.0
    %380 = vmatpush1.msra.mxu0 0.0
    %381 = vmatprep.subr.mxu0 0.0
    %382 = vmatpush1.msra.mxu0 0.0
    %383 = vmatprep.subr.mxu0 0.0
    %384 = vmatpush1.msra.mxu0 0.0
    %385 = vmatprep.subr.mxu0 0.0
    %386 = vmatpush1.msra.mxu0 0.0
    %387 = vmatprep.subr.mxu0 0.0
    %388 = vmatpush1.msra.mxu0 0.0
    %389 = vmatprep.subr.mxu0 0.0
    %390 = vmatpush1.msra.mxu0 0.0
    %391 = vmatprep.subr.mxu0 0.0
    %392 = vmatpush1.msra.mxu0 0.0
    %393 = vmatprep.subr.mxu0 0.0
    %394 = vmatpush1.msra.mxu0 0.0
    %395 = vmatprep.subr.mxu0 0.0
    %396 = vmatpush1.msra.mxu0 0.0
    %397 = vmatprep.subr.mxu0 0.0
    %398 = vmatpush1.msra.mxu0 0.0
    %399 = vmatprep.subr.mxu0 0.0
    %400 = vmatpush1.msra.mxu0 0.0
    %401 = vmatprep.subr.mxu0 0.0
    %402 = vmatpush1.msra.mxu0 0.0
    %403 = vmatprep.subr.mxu0 0.0
    %404 = vmatpush1.msra.mxu0 0.0
    %405 = vmatprep.subr.mxu0 0.0
    %406 = vmatpush1.msra.mxu0 0.0
    %407 = vmatprep.subr.mxu0 0.0
    %408 = vmatpush1.msra.mxu0 0.0
    %409 = vmatprep.subr.mxu0 0.0
    %410 = vmatpush1.msra.mxu0 0.0
    %411 = vmatprep.subr.mxu0 0.0
    %412 = vmatpush1.msra.mxu0 0.0
    %413 = vmatprep.subr.mxu0 0.0
    %414 = vmatpush1.msra.mxu0 0.0
    %415 = vmatprep.subr.mxu0 0.0
    %416 = vmatpush1.msra.mxu0 0.0
    %417 = vmatprep.subr.mxu0 0.0
    %418 = vmatpush1.msra.mxu0 0.0
    %419 = vmatprep.subr.mxu0 0.0
    %420 = vmatpush1.msra.mxu0 0.0
    %421 = vmatprep.mubr.f32.mxu0 0.0
    %v422 = vand.u32 %v138, 4294901760
    %v423 = vsub.f32 %v138, %v422
    %424 = vmatmul.mubr.f32.gmra.mrb[0].mxu0 %v423
    %v425 = vpop.f32.mrb[0].mxu0
    %v426 = vadd.f32 %v336, %v425
    %v427 = vpop.f32.mrb[0].mxu0
    %428 = vmatprep.mubr.f32.mxu0 0.0
    %v429 = vand.u32 %v141, 4294901760
    %v430 = vsub.f32 %v141, %v429
    %431 = vmatmul.mubr.f32.gmra.mrb[0].mxu0 %v430
    %v432 = vpop.f32.mrb[0].mxu0
    %v433 = vadd.f32 %v342, %v432
    %v434 = vpop.f32.mrb[0].mxu0
    %435 = vdwg.mxu0
    %436 = vmatprep.subr.mxu0 0.0
    %v437 = vand.u32 %v130, 4294901760
    %438 = vmatpush1.msra.mxu0 %v437
    %439 = vmatprep.subr.mxu0 0.0
    %v440 = vand.u32 %v131, 4294901760
    %441 = vmatpush1.msra.mxu0 %v440
    %442 = vmatprep.subr.mxu0 0.0
    %v443 = vand.u32 %v132, 4294901760
    %444 = vmatpush1.msra.mxu0 %v443
    %445 = vmatprep.subr.mxu0 0.0
    %v446 = vand.u32 %v133, 4294901760
    %447 = vmatpush1.msra.mxu0 %v446
    %448 = vmatprep.subr.mxu0 0.0
    %v449 = vand.u32 %v134, 4294901760
    %450 = vmatpush1.msra.mxu0 %v449
    %451 = vmatprep.subr.mxu0 0.0
    %v452 = vand.u32 %v145, 4294901760
    %453 = vmatpush1.msra.mxu0 %v452
    %454 = vmatprep.subr.mxu0 0.0
    %455 = vmatpush1.msra.mxu0 0.0
    %456 = vmatprep.subr.mxu0 0.0
    %457 = vmatpush1.msra.mxu0 0.0
    %458 = vmatprep.subr.mxu0 0.0
    %459 = vmatpush1.msra.mxu0 0.0
    %460 = vmatprep.subr.mxu0 0.0
    %461 = vmatpush1.msra.mxu0 0.0
    %462 = vmatprep.subr.mxu0 0.0
    %463 = vmatpush1.msra.mxu0 0.0
    %464 = vmatprep.subr.mxu0 0.0
    %465 = vmatpush1.msra.mxu0 0.0
    %466 = vmatprep.subr.mxu0 0.0
    %467 = vmatpush1.msra.mxu0 0.0
    %468 = vmatprep.subr.mxu0 0.0
    %469 = vmatpush1.msra.mxu0 0.0
    %470 = vmatprep.subr.mxu0 0.0
    %471 = vmatpush1.msra.mxu0 0.0
    %472 = vmatprep.subr.mxu0 0.0
    %473 = vmatpush1.msra.mxu0 0.0
    %474 = vmatprep.subr.mxu0 0.0
    %475 = vmatpush1.msra.mxu0 0.0
    %476 = vmatprep.subr.mxu0 0.0
    %477 = vmatpush1.msra.mxu0 0.0
    %478 = vmatprep.subr.mxu0 0.0
    %479 = vmatpush1.msra.mxu0 0.0
    %480 = vmatprep.subr.mxu0 0.0
    %481 = vmatpush1.msra.mxu0 0.0
    %482 = vmatprep.subr.mxu0 0.0
    %483 = vmatpush1.msra.mxu0 0.0
    %484 = vmatprep.subr.mxu0 0.0
    %485 = vmatpush1.msra.mxu0 0.0
    %486 = vmatprep.subr.mxu0 0.0
    %487 = vmatpush1.msra.mxu0 0.0
    %488 = vmatprep.subr.mxu0 0.0
    %489 = vmatpush1.msra.mxu0 0.0
    %490 = vmatprep.subr.mxu0 0.0
    %491 = vmatpush1.msra.mxu0 0.0
    %492 = vmatprep.subr.mxu0 0.0
    %493 = vmatpush1.msra.mxu0 0.0
    %494 = vmatprep.subr.mxu0 0.0
    %495 = vmatpush1.msra.mxu0 0.0
    %496 = vmatprep.subr.mxu0 0.0
    %497 = vmatpush1.msra.mxu0 0.0
    %498 = vmatprep.subr.mxu0 0.0
    %499 = vmatpush1.msra.mxu0 0.0
    %500 = vmatprep.subr.mxu0 0.0
    %501 = vmatpush1.msra.mxu0 0.0
    %502 = vmatprep.subr.mxu0 0.0
    %503 = vmatpush1.msra.mxu0 0.0
    %504 = vmatprep.subr.mxu0 0.0
    %505 = vmatpush1.msra.mxu0 0.0
    %506 = vmatprep.mubr.f32.mxu0 0.0
    %v507 = vand.u32 %v138, 4294901760
    %v508 = vsub.f32 %v138, %v507
    %v509 = vand.u32 %v508, 4294901760
    %510 = vmatmul.mubr.f32.gmra.mrb[0].mxu0 %v509
    %v511 = vpop.f32.mrb[0].mxu0
    %v512 = vadd.f32 %v426, %v511
    %v513 = vpop.f32.mrb[0].mxu0
    %514 = vmatprep.mubr.f32.mxu0 0.0
    %v515 = vand.u32 %v141, 4294901760
    %v516 = vsub.f32 %v141, %v515
    %v517 = vand.u32 %v516, 4294901760
    %518 = vmatmul.mubr.f32.gmra.mrb[0].mxu0 %v517
    %v519 = vpop.f32.mrb[0].mxu0
    %v520 = vadd.f32 %v433, %v519
    %v521 = vpop.f32.mrb[0].mxu0
    %522 = vdwg.mxu0
    %523 = vmatprep.subr.mxu0 0.0
    %v524 = vand.u32 %v130, 4294901760
    %v525 = vsub.f32 %v130, %v524
    %v526 = vand.u32 %v525, 4294901760
    %527 = vmatpush1.msra.mxu0 %v526
    %528 = vmatprep.subr.mxu0 0.0
    %v529 = vand.u32 %v131, 4294901760
    %v530 = vsub.f32 %v131, %v529
    %v531 = vand.u32 %v530, 4294901760
    %532 = vmatpush1.msra.mxu0 %v531
    %533 = vmatprep.subr.mxu0 0.0
    %v534 = vand.u32 %v132, 4294901760
    %v535 = vsub.f32 %v132, %v534
    %v536 = vand.u32 %v535, 4294901760
    %537 = vmatpush1.msra.mxu0 %v536
    %538 = vmatprep.subr.mxu0 0.0
    %v539 = vand.u32 %v133, 4294901760
    %v540 = vsub.f32 %v133, %v539
    %v541 = vand.u32 %v540, 4294901760
    %542 = vmatpush1.msra.mxu0 %v541
    %543 = vmatprep.subr.mxu0 0.0
    %v544 = vand.u32 %v134, 4294901760
    %v545 = vsub.f32 %v134, %v544
    %v546 = vand.u32 %v545, 4294901760
    %547 = vmatpush1.msra.mxu0 %v546
    %548 = vmatprep.subr.mxu0 0.0
    %v549 = vand.u32 %v145, 4294901760
    %v550 = vsub.f32 %v145, %v549
    %v551 = vand.u32 %v550, 4294901760
    %552 = vmatpush1.msra.mxu0 %v551
    %553 = vmatprep.subr.mxu0 0.0
    %554 = vmatpush1.msra.mxu0 0.0
    %555 = vmatprep.subr.mxu0 0.0
    %556 = vmatpush1.msra.mxu0 0.0
    %557 = vmatprep.subr.mxu0 0.0
    %558 = vmatpush1.msra.mxu0 0.0
    %559 = vmatprep.subr.mxu0 0.0
    %560 = vmatpush1.msra.mxu0 0.0
    %561 = vmatprep.subr.mxu0 0.0
    %562 = vmatpush1.msra.mxu0 0.0
    %563 = vmatprep.subr.mxu0 0.0
    %564 = vmatpush1.msra.mxu0 0.0
    %565 = vmatprep.subr.mxu0 0.0
    %566 = vmatpush1.msra.mxu0 0.0
    %567 = vmatprep.subr.mxu0 0.0
    %568 = vmatpush1.msra.mxu0 0.0
    %569 = vmatprep.subr.mxu0 0.0
    %570 = vmatpush1.msra.mxu0 0.0
    %571 = vmatprep.subr.mxu0 0.0
    %572 = vmatpush1.msra.mxu0 0.0
    %573 = vmatprep.subr.mxu0 0.0
    %574 = vmatpush1.msra.mxu0 0.0
    %575 = vmatprep.subr.mxu0 0.0
    %576 = vmatpush1.msra.mxu0 0.0
    %577 = vmatprep.subr.mxu0 0.0
    %578 = vmatpush1.msra.mxu0 0.0
    %579 = vmatprep.subr.mxu0 0.0
    %580 = vmatpush1.msra.mxu0 0.0
    %581 = vmatprep.subr.mxu0 0.0
    %582 = vmatpush1.msra.mxu0 0.0
    %583 = vmatprep.subr.mxu0 0.0
    %584 = vmatpush1.msra.mxu0 0.0
    %585 = vmatprep.subr.mxu0 0.0
    %586 = vmatpush1.msra.mxu0 0.0
    %587 = vmatprep.subr.mxu0 0.0
    %588 = vmatpush1.msra.mxu0 0.0
    %589 = vmatprep.subr.mxu0 0.0
    %590 = vmatpush1.msra.mxu0 0.0
    %591 = vmatprep.subr.mxu0 0.0
    %592 = vmatpush1.msra.mxu0 0.0
    %593 = vmatprep.subr.mxu0 0.0
    %594 = vmatpush1.msra.mxu0 0.0
    %595 = vmatprep.subr.mxu0 0.0
    %596 = vmatpush1.msra.mxu0 0.0
    %597 = vmatprep.subr.mxu0 0.0
    %598 = vmatpush1.msra.mxu0 0.0
    %599 = vmatprep.subr.mxu0 0.0
    %600 = vmatpush1.msra.mxu0 0.0
    %601 = vmatprep.subr.mxu0 0.0
    %602 = vmatpush1.msra.mxu0 0.0
    %603 = vmatprep.subr.mxu0 0.0
    %604 = vmatpush1.msra.mxu0 0.0
    %605 = vmatprep.mubr.f32.mxu0 0.0
    %v606 = vand.u32 %v138, 4294901760
    %607 = vmatmul.mubr.f32.gmra.mrb[0].mxu0 %v606
    %v608 = vpop.f32.mrb[0].mxu0
    %v609 = vadd.f32 %v512, %v608
    %v610 = vpop.f32.mrb[0].mxu0
    %611 = vmatprep.mubr.f32.mxu0 0.0
    %v612 = vand.u32 %v141, 4294901760
    %613 = vmatmul.mubr.f32.gmra.mrb[0].mxu0 %v612
    %v614 = vpop.f32.mrb[0].mxu0
    %v615 = vadd.f32 %v520, %v614
    %v616 = vpop.f32.mrb[0].mxu0
    %617 = vdwg.mxu0
    %618 = vmatprep.subr.mxu0 0.0
    %v619 = vand.u32 %v130, 4294901760
    %620 = vmatpush1.msra.mxu0 %v619
    %621 = vmatprep.subr.mxu0 0.0
    %v622 = vand.u32 %v131, 4294901760
    %623 = vmatpush1.msra.mxu0 %v622
    %624 = vmatprep.subr.mxu0 0.0
    %v625 = vand.u32 %v132, 4294901760
    %626 = vmatpush1.msra.mxu0 %v625
    %627 = vmatprep.subr.mxu0 0.0
    %v628 = vand.u32 %v133, 4294901760
    %629 = vmatpush1.msra.mxu0 %v628
    %630 = vmatprep.subr.mxu0 0.0
    %v631 = vand.u32 %v134, 4294901760
    %632 = vmatpush1.msra.mxu0 %v631
    %633 = vmatprep.subr.mxu0 0.0
    %v634 = vand.u32 %v145, 4294901760
    %635 = vmatpush1.msra.mxu0 %v634
    %636 = vmatprep.subr.mxu0 0.0
    %637 = vmatpush1.msra.mxu0 0.0
    %638 = vmatprep.subr.mxu0 0.0
    %639 = vmatpush1.msra.mxu0 0.0
    %640 = vmatprep.subr.mxu0 0.0
    %641 = vmatpush1.msra.mxu0 0.0
    %642 = vmatprep.subr.mxu0 0.0
    %643 = vmatpush1.msra.mxu0 0.0
    %644 = vmatprep.subr.mxu0 0.0
    %645 = vmatpush1.msra.mxu0 0.0
    %646 = vmatprep.subr.mxu0 0.0
    %647 = vmatpush1.msra.mxu0 0.0
    %648 = vmatprep.subr.mxu0 0.0
    %649 = vmatpush1.msra.mxu0 0.0
    %650 = vmatprep.subr.mxu0 0.0
    %651 = vmatpush1.msra.mxu0 0.0
    %652 = vmatprep.subr.mxu0 0.0
    %653 = vmatpush1.msra.mxu0 0.0
    %654 = vmatprep.subr.mxu0 0.0
    %655 = vmatpush1.msra.mxu0 0.0
    %656 = vmatprep.subr.mxu0 0.0
    %657 = vmatpush1.msra.mxu0 0.0
    %658 = vmatprep.subr.mxu0 0.0
    %659 = vmatpush1.msra.mxu0 0.0
    %660 = vmatprep.subr.mxu0 0.0
    %661 = vmatpush1.msra.mxu0 0.0
    %662 = vmatprep.subr.mxu0 0.0
    %663 = vmatpush1.msra.mxu0 0.0
    %664 = vmatprep.subr.mxu0 0.0
    %665 = vmatpush1.msra.mxu0 0.0
    %666 = vmatprep.subr.mxu0 0.0
    %667 = vmatpush1.msra.mxu0 0.0
    %668 = vmatprep.subr.mxu0 0.0
    %669 = vmatpush1.msra.mxu0 0.0
    %670 = vmatprep.subr.mxu0 0.0
    %671 = vmatpush1.msra.mxu0 0.0
    %672 = vmatprep.subr.mxu0 0.0
    %673 = vmatpush1.msra.mxu0 0.0
    %674 = vmatprep.subr.mxu0 0.0
    %675 = vmatpush1.msra.mxu0 0.0
    %676 = vmatprep.subr.mxu0 0.0
    %677 = vmatpush1.msra.mxu0 0.0
    %678 = vmatprep.subr.mxu0 0.0
    %679 = vmatpush1.msra.mxu0 0.0
    %680 = vmatprep.subr.mxu0 0.0
    %681 = vmatpush1.msra.mxu0 0.0
    %682 = vmatprep.subr.mxu0 0.0
    %683 = vmatpush1.msra.mxu0 0.0
    %684 = vmatprep.subr.mxu0 0.0
    %685 = vmatpush1.msra.mxu0 0.0
    %686 = vmatprep.subr.mxu0 0.0
    %687 = vmatpush1.msra.mxu0 0.0
    %688 = vmatprep.mubr.f32.mxu0 0.0
    %v689 = vand.u32 %v138, 4294901760
    %690 = vmatmul.mubr.f32.gmra.mrb[0].mxu0 %v689
    %v691 = vpop.f32.mrb[0].mxu0
    %v692 = vadd.f32 %v609, %v691
    %v693 = vpop.f32.mrb[0].mxu0
    %694 = vmatprep.mubr.f32.mxu0 0.0
    %v695 = vand.u32 %v141, 4294901760
    %696 = vmatmul.mubr.f32.gmra.mrb[0].mxu0 %v695
    %v697 = vpop.f32.mrb[0].mxu0
    %v698 = vadd.f32 %v615, %v697
    %v699 = vpop.f32.mrb[0].mxu0
    %700 = vdwg.mxu0
    %701 = vst [vmem:[#allocation5] sm:$0xff] %v692
    %702 = vst [vmem:[#allocation5 + $0x8] sm:$0xff] %v698
    // Predicated region
    $region14: #{tpu_custom_call.1} parent=1 // pred_check
      _
    $region15: #{tpu_custom_call.1} parent=1 // pred_check_branch
      %704 = sbr.rel (0) target = $region17
    $region16: #{tpu_custom_call.1} parent=1 // pred_region
      %s706 = ssub.s32 256, 256
      %707 = vsyncadd [#allocation4], %s706
      %s708 = sshll.u32 [#allocation5], 4
      %s709 = int_to_ptr.vmem [resolvable:$true] %s708
      %714 = dma.vmem_to_hbm [thread:$0]  %s709, 256, %s2, [#allocation4], 128, 128, 8
    $region17: #{tpu_custom_call.1} parent=1 // pred_fallthru
      _
    // Predicated region
    $region18: #{tpu_custom_call.1} parent=1 // pred_check
      _
    $region19: #{tpu_custom_call.1} parent=1 // pred_check_branch
      %716 = sbr.rel (0) target = $region21
    $region20: #{tpu_custom_call.1} parent=1 // pred_region
      %717 = dma.done [#allocation4], 256
    $region21: #{tpu_custom_call.1} parent=1 // pred_fallthru
      _
    %718 = vsyncpa [#allocation3], 1
    %719 = vsyncpa [#allocation4], 1

</llo_original>
